<compile_context>
chip_gen: v7x
topology: tpu7x:2x2x1
jax: 0.10.0
libtpu: 0.0.40
codegen_flags: <defaults>
</compile_context>

<pallas_src>
import functools

import jax
import jax.numpy as jnp
from jax.experimental import pallas as pl
from jax.experimental.pallas import tpu as pltpu


def _conv1x1_hswish_kernel(x_ref, w_ref, b_ref, o_ref):
    # x_ref: (C_in, TS)   one spatial tile of one batch element (lane-dense)
    # w_ref: (C_out, C_in)  VMEM-resident across grid steps
    # b_ref: (C_out, 1)     VMEM-resident across grid steps
    # o_ref: (C_out, TS)    lane-dense, NCHW-native output tile
    x = x_ref[...]
    w = w_ref[...]
    c_in = x.shape[0]
    # K = C_in = 3: an MXU contraction would be padded to 128/256, so do the
    # 1x1 conv as C_in broadcast FMAs on the VPU, with the bias as the
    # accumulator init.  Kernel stays HBM-bound; this just shortens the
    # per-tile critical path and drops the MXU dependency.
    t1 = w[:, 0:1] * x[0:1, :] + b_ref[...]
    for c in range(1, c_in):
        t1 = t1 + w[:, c:c + 1] * x[c:c + 1, :]
    # 2 * hardswish(t1) = t1 * clamp(t1 + 3, 0, 6) / 3
    o_ref[...] = (t1 * jnp.clip(t1 + 3.0, 0.0, 6.0)
                  * (1.0 / 3.0)).astype(o_ref.dtype)


def _choose_spatial_tile(s, n_batch, *, max_tile=2048, min_total_tiles=4):
    """Lane-aligned spatial tile.

    - multiple of 128 (unless it equals the full flat dim) for unmasked vst
    - capped at max_tile (output tile = 32*ts*4 bytes, ~256 KB at ts=2048)
    - small enough that the grid has >= min_total_tiles steps overall so v7x
      megacore sharding of the "parallel" axes has work for both cores.
    """
    if s <= 256:
        return s
    want = max(1, -(-min_total_tiles // n_batch))   # spatial tiles per batch
    ts = -(-s // want)                              # cdiv(s, want)
    ts = -(-ts // 128) * 128                        # round up to lane multiple
    ts = max(128, min(ts, max_tile))
    return min(ts, s)


@functools.partial(jax.jit, static_argnames=("max_tile",))
def conv1x1_pad1_double_hardswish(x_nchw, weight, bias, *, max_tile=2048):
    """x_nchw: (N, C_in, H, W) f32; weight: (C_out, C_in, 1, 1); bias: (C_out,)."""
    n, c_in, h, w = x_nchw.shape
    c_out = weight.shape[0]
    hp, wp = h + 2, w + 2
    s = hp * wp

    # padding=1 with a 1x1 kernel: pad the small 3-channel input spatially;
    # border outputs then reduce to 2*hardswish(bias) via the same FMA+epilogue.
    # TODO(synk): fold this pad into the kernel (border-constant fill) if the
    # extra fusion ever shows up in the trace.
    x_pad = jnp.pad(x_nchw, ((0, 0), (0, 0), (1, 1), (1, 1)))
    x_flat = x_pad.reshape(n, c_in, s)                 # free reshape, NCHW-native

    w_mat = weight.reshape(c_out, c_in).astype(jnp.float32)   # (C_out, C_in)
    b_col = bias.reshape(c_out, 1).astype(jnp.float32)        # (C_out, 1)

    ts = _choose_spatial_tile(s, n, max_tile=max_tile)
    num_s = pl.cdiv(s, ts)

    cost = pl.CostEstimate(
        flops=2 * n * s * c_in * c_out,
        transcendentals=0,
        bytes_accessed=4 * (n * s * c_in + n * s * c_out + c_in * c_out + c_out),
    )

    out_flat = pl.pallas_call(
        _conv1x1_hswish_kernel,
        out_shape=jax.ShapeDtypeStruct((n, c_out, s), jnp.float32),
        grid=(n, num_s),
        in_specs=[
            pl.BlockSpec((None, c_in, ts), lambda b, i: (b, 0, i)),  # activations
            pl.BlockSpec((c_out, c_in), lambda b, i: (0, 0)),        # weight (resident)
            pl.BlockSpec((c_out, 1), lambda b, i: (0, 0)),           # bias (resident)
        ],
        out_specs=pl.BlockSpec((None, c_out, ts), lambda b, i: (b, 0, i)),
        compiler_params=pltpu.CompilerParams(
            dimension_semantics=("parallel", "parallel")),
        cost_estimate=cost,
    )(x_flat, w_mat, b_col)

    return out_flat.reshape(n, c_out, hp, wp)          # free reshape, already NCHW


def _reference(x_nchw, weight, bias):
    # Pure-JAX reference matching the PyTorch module.
    x_pad = jnp.pad(x_nchw, ((0, 0), (0, 0), (1, 1), (1, 1)))
    t1 = jnp.einsum("nchw,oc->nohw", x_pad, weight.reshape(weight.shape[0], -1))
    t1 = t1 + bias[None, :, None, None]
    t3 = jnp.clip(t1 + 3.0, 0.0, 6.0)
    t7 = t1 * t3 / 6.0
    return t7 + t7


if __name__ == "__main__":
    key = jax.random.PRNGKey(0)
    k_x, k_w, k_b, k_x2 = jax.random.split(key, 4)

    # Small shapes consistent with the module's Conv2d(3, 32, 1, padding=1).
    N, C_IN, H, W = 2, 3, 16, 16
    C_OUT = 32

    x1 = jax.random.normal(k_x, (N, C_IN, H, W), dtype=jnp.float32)
    fan_in = C_IN * 1 * 1
    bound = 1.0 / (fan_in ** 0.5)
    weight = jax.random.uniform(k_w, (C_OUT, C_IN, 1, 1),
                                minval=-bound, maxval=bound, dtype=jnp.float32)
    bias = jax.random.uniform(k_b, (C_OUT,),
                              minval=-bound, maxval=bound, dtype=jnp.float32)

    # Small multi-batch case (S = 18*18 = 324, 2 spatial tiles).
    out = conv1x1_pad1_double_hardswish(x1, weight, bias)
    out = jax.block_until_ready(out)
    ref = _reference(x1, weight, bias)
    assert out.shape == (N, C_OUT, H + 2, W + 2), out.shape
    assert jnp.allclose(out, ref, atol=1e-5, rtol=1e-5), "mismatch vs reference"

    # Spec-sized input 1x3x64x64 -> S = 66*66 = 4356, 4 spatial tiles of 1152.
    x2 = jax.random.normal(k_x2, (1, C_IN, 64, 64), dtype=jnp.float32)
    out2 = jax.block_until_ready(conv1x1_pad1_double_hardswish(x2, weight, bias))
    ref2 = _reference(x2, weight, bias)
    assert out2.shape == (1, C_OUT, 66, 66), out2.shape
    assert jnp.allclose(out2, ref2, atol=1e-5, rtol=1e-5), "mismatch vs reference (tiled)"

    print("KERNEL_OK")
</pallas_src>

<mosaic_0001>
module attributes {stable_mosaic.version = 11 : i64} {
  func.func @_conv1x1_hswish_kernel(%arg0: i32, %arg1: i32, %arg2: memref<1x3x256xf32, #tpu.memory_space<vmem>>, %arg3: memref<32x3xf32, #tpu.memory_space<vmem>>, %arg4: memref<32x1xf32, #tpu.memory_space<vmem>>, %arg5: memref<1x32x256xf32, #tpu.memory_space<vmem>>) attributes {dimension_semantics = [#tpu.dimension_semantics<parallel>, #tpu.dimension_semantics<parallel>], iteration_bounds = array<i64: 2, 2>, scalar_prefetch = 0 : i64, scratch_operands = 0 : i64, tpu.core_type = #tpu.core_type<tc>, window_params = [{transform_indices = @transform_0, window_bounds = array<i64: 1, 3, 256>}, {pipeline_mode = #tpu.pipeline_mode<synchronous>, transform_indices = @transform_1, window_bounds = array<i64: 32, 3>}, {pipeline_mode = #tpu.pipeline_mode<synchronous>, transform_indices = @transform_2, window_bounds = array<i64: 32, 1>}, {transform_indices = @transform_3, window_bounds = array<i64: 1, 32, 256>}]} {
    %c0 = arith.constant 0 : index
    %c0_0 = arith.constant 0 : index
    %c0_1 = arith.constant 0 : index
    %0 = vector.load %arg2[%c0, %c0_0, %c0_1] : memref<1x3x256xf32, #tpu.memory_space<vmem>>, vector<1x3x256xf32>
    %1 = vector.shape_cast %0 : vector<1x3x256xf32> to vector<3x256xf32>
    %c0_2 = arith.constant 0 : index
    %c0_3 = arith.constant 0 : index
    %2 = vector.load %arg3[%c0_2, %c0_3] : memref<32x3xf32, #tpu.memory_space<vmem>>, vector<32x3xf32>
    %3 = vector.extract_strided_slice %2 {offsets = [0, 0], sizes = [32, 1], strides = [1, 1]} : vector<32x3xf32> to vector<32x1xf32>
    %4 = vector.extract_strided_slice %1 {offsets = [0, 0], sizes = [1, 256], strides = [1, 1]} : vector<3x256xf32> to vector<1x256xf32>
    %5 = vector.broadcast %3 : vector<32x1xf32> to vector<32x256xf32>
    %6 = vector.broadcast %4 : vector<1x256xf32> to vector<32x256xf32>
    %7 = arith.mulf %5, %6 : vector<32x256xf32>
    %c0_4 = arith.constant 0 : index
    %c0_5 = arith.constant 0 : index
    %8 = vector.load %arg4[%c0_4, %c0_5] : memref<32x1xf32, #tpu.memory_space<vmem>>, vector<32x1xf32>
    %9 = vector.broadcast %8 : vector<32x1xf32> to vector<32x256xf32>
    %10 = arith.addf %7, %9 : vector<32x256xf32>
    %11 = vector.extract_strided_slice %2 {offsets = [0, 1], sizes = [32, 1], strides = [1, 1]} : vector<32x3xf32> to vector<32x1xf32>
    %12 = vector.extract_strided_slice %1 {offsets = [1, 0], sizes = [1, 256], strides = [1, 1]} : vector<3x256xf32> to vector<1x256xf32>
    %13 = vector.broadcast %11 : vector<32x1xf32> to vector<32x256xf32>
    %14 = vector.broadcast %12 : vector<1x256xf32> to vector<32x256xf32>
    %15 = arith.mulf %13, %14 : vector<32x256xf32>
    %16 = arith.addf %10, %15 : vector<32x256xf32>
    %17 = vector.extract_strided_slice %2 {offsets = [0, 2], sizes = [32, 1], strides = [1, 1]} : vector<32x3xf32> to vector<32x1xf32>
    %18 = vector.extract_strided_slice %1 {offsets = [2, 0], sizes = [1, 256], strides = [1, 1]} : vector<3x256xf32> to vector<1x256xf32>
    %19 = vector.broadcast %17 : vector<32x1xf32> to vector<32x256xf32>
    %20 = vector.broadcast %18 : vector<1x256xf32> to vector<32x256xf32>
    %21 = arith.mulf %19, %20 : vector<32x256xf32>
    %22 = arith.addf %16, %21 : vector<32x256xf32>
    %cst = arith.constant 3.000000e+00 : f32
    %23 = vector.broadcast %cst : f32 to vector<32x256xf32>
    %24 = arith.addf %22, %23 : vector<32x256xf32>
    %cst_6 = arith.constant 0.000000e+00 : f32
    %cst_7 = arith.constant 6.000000e+00 : f32
    %25 = vector.broadcast %cst_6 : f32 to vector<32x256xf32>
    %26 = arith.maximumf %25, %24 : vector<32x256xf32>
    %27 = vector.broadcast %cst_7 : f32 to vector<32x256xf32>
    %28 = arith.minimumf %27, %26 : vector<32x256xf32>
    %29 = arith.mulf %22, %28 : vector<32x256xf32>
    %cst_8 = arith.constant 0.333333343 : f32
    %30 = vector.broadcast %cst_8 : f32 to vector<32x256xf32>
    %31 = arith.mulf %29, %30 : vector<32x256xf32>
    %c0_9 = arith.constant 0 : index
    %c0_10 = arith.constant 0 : index
    %c0_11 = arith.constant 0 : index
    %32 = vector.load %arg5[%c0_9, %c0_10, %c0_11] : memref<1x32x256xf32, #tpu.memory_space<vmem>>, vector<1x32x256xf32>
    %33 = vector.shape_cast %32 : vector<1x32x256xf32> to vector<32x256xf32>
    %34 = vector.shape_cast %31 : vector<32x256xf32> to vector<1x32x256xf32>
    tpu.vector_store %arg5[%c0_9, %c0_10, %c0_11], %34 {strides = array<i32>} : memref<1x32x256xf32, #tpu.memory_space<vmem>>, vector<1x32x256xf32>,
    return
  }
  func.func @transform_0(%arg0: i32, %arg1: i32) -> (i32, i32, i32) {
    %c0_i32 = arith.constant 0 : i32
    %c0_i32_0 = arith.constant 0 : i32
    return %arg0, %c0_i32, %arg1 : i32, i32, i32
  }
  func.func @transform_1(%arg0: i32, %arg1: i32) -> (i32, i32) {
    %c0_i32 = arith.constant 0 : i32
    %c0_i32_0 = arith.constant 0 : i32
    %c0_i32_1 = arith.constant 0 : i32
    return %c0_i32, %c0_i32_0 : i32, i32
  }
  func.func @transform_2(%arg0: i32, %arg1: i32) -> (i32, i32) {
    %c0_i32 = arith.constant 0 : i32
    %c0_i32_0 = arith.constant 0 : i32
    %c0_i32_1 = arith.constant 0 : i32
    return %c0_i32, %c0_i32_0 : i32, i32
  }
  func.func @transform_3(%arg0: i32, %arg1: i32) -> (i32, i32, i32) {
    %c0_i32 = arith.constant 0 : i32
    %c0_i32_0 = arith.constant 0 : i32
    return %arg0, %c0_i32, %arg1 : i32, i32, i32
  }
}

</mosaic_0001>

<llo_original>
// kernel: conv1x1_pad1_double_hardswish.1
$region0: #{conv1x1_pad1_double_hardswish.1}
  #allocation0 [shape = 'u32[]', space=smem, size = 0x4, offset = 0x4, fixed_abs, tag = 'smem constant byte address 0x4 - core index']
  #allocation1 [shape = 'u32[144,128]{1,0:T(1,128)}', space=vmem, size = 0x12000, scoped, tag = 'internal scratch']
  %s0 = inlined_call_operand.vmem [shape: f32[2,3,324], index: 0, kind: input, shape index: {}]
  %s1 = inlined_call_operand.vmem [shape: f32[32,3], index: 1, kind: input, shape index: {}]
  %s2 = inlined_call_operand.vmem [shape: f32[32,1], index: 2, kind: input, shape index: {}]
  %s3 = inlined_call_operand.vmem [shape: f32[2,32,324], index: 3, kind: output, shape index: {}]
  %s4 = sld [smem:[#allocation0]]
  $region107: #{conv1x1_pad1_double_hardswish.1} parent=0
    _
  %s6 = ssub.s32 1, %s4
  %s7 = scalar_select 0, %s6, %s4
  $region1: #{conv1x1_pad1_double_hardswish.1} parent=0
    #allocation2 [shape = 'u8[65536]{0}', space=vmem, size = 0x10000, scoped, tag = 'output window, operand 0']
    loop: start=0, step=1, limit=6
    $region2: #{conv1x1_pad1_double_hardswish.1} parent=1 // loop_pre_header
      _
    $region3: #{conv1x1_pad1_double_hardswish.1} parent=1 // loop_header
      %s9 = sphi 0, %s13
      %p10 = scmp.ge.s32.totalorder %s9, 6
      %s16 = sphi 0, %s28
      %s17 = sphi 0, %s24
      %s18 = sphi 0, %s16
      %s19 = sphi 0, %s17
      %s20 = sphi 0, %s18
      %s21 = sphi 0, %s19
      %s33 = sphi 0, %s35
      %s36 = sphi 0, %s33
      %s37 = sphi 0, %s36
      %s53 = sphi 0, %s37
      %s57 = sphi 0, %s57
      %s59 = sphi 0, %s57
      %s60 = sphi 0, %s59
      %s74 = sphi 0, %s60
      %s78 = sphi 0, %s78
      %s80 = sphi 0, %s78
      %s81 = sphi 0, %s80
      %s95 = sphi 0, %s81
      %s103 = sphi 0, %s105
      %s106 = sphi 0, %s103
      %s107 = sphi 0, %s106
      %s123 = sphi 0, %s107
    $region4: #{conv1x1_pad1_double_hardswish.1} parent=1 // loop_header_branch
      %12 = sbr.rel (%p10) target = $region8
    $region5: #{conv1x1_pad1_double_hardswish.1} parent=1 // loop_body
      %s14 = ssub.s32 %s9, 1
      %s15 = ssub.s32 %s9, 2
      %s22 = sadd.s32 1, %s17
      %p23 = scmp.ge.s32.totalorder %s22, 2
      %s24 = scalar_select %p23, 0, %s22
      %s25 = sadd.s32 1, %s16
      %s26 = scalar_select %p23, %s25, %s16
      %p27 = scmp.ge.s32.totalorder %s26, 2
      %s28 = scalar_select %p27, 0, %s26
      %s29 = ssub.s32 %s16, %s28
      %s30 = ssub.s32 %s17, %s24
      %s31 = sor.u32 %s29, %s30
      %p32 = scmp.eq.s32.totalorder %s31, 0
      %s34 = sadd.s32 %s33, 1
      %s35 = scalar_select %p32, %s33, %s34
      %p38 = pneg %p32
      %p39 = scmp.eq.s32.totalorder %s9, 3
      %p40 = por %p38, %p39
      %p41 = scmp.ne.s32.totalorder %s33, %s36
      %p42 = scmp.eq.s32.totalorder %s9, 0
      %p43 = por %p41, %p42
      %p44 = scmp.ne.s32.totalorder %s33, %s36
      %p45 = scmp.eq.s32.totalorder %s14, 3
      %p46 = por %p44, %p45
      %p47 = scmp.ne.s32.totalorder %s36, %s37
      %p48 = scmp.eq.s32.totalorder %s14, 0
      %p49 = por %p47, %p48
      %p50 = scmp.ne.s32.totalorder %s36, %s37
      %p51 = scmp.eq.s32.totalorder %s15, 3
      %p52 = por %p50, %p51
      %p54 = scmp.ne.s32.totalorder %s37, %s53
      %p55 = scmp.eq.s32.totalorder %s15, 0
      %p56 = por %p54, %p55
      %s58 = sadd.s32 %s57, 1
      %p61 = scmp.eq.s32.totalorder %s9, 3
      %p62 = scmp.ne.s32.totalorder %s57, %s59
      %p63 = scmp.eq.s32.totalorder %s9, 0
      %p64 = por %p62, %p63
      %p65 = scmp.ne.s32.totalorder %s57, %s59
      %p66 = scmp.eq.s32.totalorder %s14, 3
      %p67 = por %p65, %p66
      %p68 = scmp.ne.s32.totalorder %s59, %s60
      %p69 = scmp.eq.s32.totalorder %s14, 0
      %p70 = por %p68, %p69
      %p71 = scmp.ne.s32.totalorder %s59, %s60
      %p72 = scmp.eq.s32.totalorder %s15, 3
      %p73 = por %p71, %p72
      %p75 = scmp.ne.s32.totalorder %s60, %s74
      %p76 = scmp.eq.s32.totalorder %s15, 0
      %p77 = por %p75, %p76
      %s79 = sadd.s32 %s78, 1
      %p82 = scmp.eq.s32.totalorder %s9, 3
      %p83 = scmp.ne.s32.totalorder %s78, %s80
      %p84 = scmp.eq.s32.totalorder %s9, 0
      %p85 = por %p83, %p84
      %p86 = scmp.ne.s32.totalorder %s78, %s80
      %p87 = scmp.eq.s32.totalorder %s14, 3
      %p88 = por %p86, %p87
      %p89 = scmp.ne.s32.totalorder %s80, %s81
      %p90 = scmp.eq.s32.totalorder %s14, 0
      %p91 = por %p89, %p90
      %p92 = scmp.ne.s32.totalorder %s80, %s81
      %p93 = scmp.eq.s32.totalorder %s15, 3
      %p94 = por %p92, %p93
      %p96 = scmp.ne.s32.totalorder %s81, %s95
      %p97 = scmp.eq.s32.totalorder %s15, 0
      %p98 = por %p96, %p97
      %s99 = ssub.s32 %s16, %s28
      %s100 = ssub.s32 %s17, %s24
      %s101 = sor.u32 %s99, %s100
      %p102 = scmp.eq.s32.totalorder %s101, 0
      %s104 = sadd.s32 %s103, 1
      %s105 = scalar_select %p102, %s103, %s104
      %p108 = pneg %p102
      %p109 = scmp.eq.s32.totalorder %s9, 3
      %p110 = por %p108, %p109
      %p111 = scmp.ne.s32.totalorder %s103, %s106
      %p112 = scmp.eq.s32.totalorder %s9, 0
      %p113 = por %p111, %p112
      %p114 = scmp.ne.s32.totalorder %s103, %s106
      %p115 = scmp.eq.s32.totalorder %s14, 3
      %p116 = por %p114, %p115
      %p117 = scmp.ne.s32.totalorder %s106, %s107
      %p118 = scmp.eq.s32.totalorder %s14, 0
      %p119 = por %p117, %p118
      %p120 = scmp.ne.s32.totalorder %s106, %s107
      %p121 = scmp.eq.s32.totalorder %s15, 3
      %p122 = por %p120, %p121
      %p124 = scmp.ne.s32.totalorder %s107, %s123
      %p125 = scmp.eq.s32.totalorder %s15, 0
      %p126 = por %p124, %p125
      %p127 = scmp.le.s32.totalorder 1, %s9
      %p128 = scmp.lt.s32.totalorder %s9, 5
      %p129 = pnand %p127, %p128
      %p130 = pneg %p129
      // Predicated region
      $region9: #{conv1x1_pad1_double_hardswish.1} parent=5 // pred_check
        _
      $region10: #{conv1x1_pad1_double_hardswish.1} parent=5 // pred_check_branch
        %132 = sbr.rel (%p129) target = $region12
      $region11: #{conv1x1_pad1_double_hardswish.1} parent=5 // pred_region
        %s133 = ssub.s32 %s9, 1
        // Predicated region
        $region13: #{conv1x1_pad1_double_hardswish.1} parent=11 // pred_check
          %p134 = pneg %p70
        $region14: #{conv1x1_pad1_double_hardswish.1} parent=11 // pred_check_branch
          %136 = sbr.rel (%p134) target = $region16
        $region15: #{conv1x1_pad1_double_hardswish.1} parent=11 // pred_region
          _
        $region16: #{conv1x1_pad1_double_hardswish.1} parent=11 // pred_fallthru
          _
        // Predicated region
        $region17: #{conv1x1_pad1_double_hardswish.1} parent=11 // pred_check
          %p137 = pneg %p91
        $region18: #{conv1x1_pad1_double_hardswish.1} parent=11 // pred_check_branch
          %139 = sbr.rel (%p137) target = $region20
        $region19: #{conv1x1_pad1_double_hardswish.1} parent=11 // pred_region
          _
        $region20: #{conv1x1_pad1_double_hardswish.1} parent=11 // pred_fallthru
          _
      $region12: #{conv1x1_pad1_double_hardswish.1} parent=5 // pred_fallthru
        _
      %p140 = scmp.lt.s32.totalorder %s9, 4
      // Predicated region
      $region21: #{conv1x1_pad1_double_hardswish.1} parent=5 // pred_check
        %p141 = pneg %p140
      $region22: #{conv1x1_pad1_double_hardswish.1} parent=5 // pred_check_branch
        %143 = sbr.rel (%p141) target = $region24
      $region23: #{conv1x1_pad1_double_hardswish.1} parent=5 // pred_region
        // Predicated region
        $region25: #{conv1x1_pad1_double_hardswish.1} parent=23 // pred_check
          %p144 = pneg %p43
        $region26: #{conv1x1_pad1_double_hardswish.1} parent=23 // pred_check_branch
          %146 = sbr.rel (%p144) target = $region28
        $region27: #{conv1x1_pad1_double_hardswish.1} parent=23 // pred_region
          %s147 = smul.u32 2, %s17
          %s148 = ssub.s32 3, %s147
          %p149 = scmp.lt.s32.totalorder %s148, 2
          %s150 = scalar_select %p149, %s148, 2
          %s151 = smul.u32 64, %s150
          %p152 = scmp.lt.s32.totalorder %s16, 1
          %s153 = scalar_select %p152, %s16, 1
          %p154 = scmp.lt.s32.totalorder %s147, 2
          %s155 = scalar_select %p154, %s147, 2
          %s156 = smul.addr %s153, 3
          %s157 = sadd.s32 %s155, %s156
          %s158 = smul.addr %s157, 4
          %s159 = scalar_lea.vmem %s0, %s158
          %s160 = smul.u32 2, %s17
          %s161 = ssub.s32 3, %s160
          %p162 = scmp.lt.s32.totalorder %s161, 2
          %s163 = scalar_select %p162, %s161, 2
          %s164 = smul.u32 64, %s163
        $region28: #{conv1x1_pad1_double_hardswish.1} parent=23 // pred_fallthru
          _
      $region24: #{conv1x1_pad1_double_hardswish.1} parent=5 // pred_fallthru
        _
      %p165 = scmp.le.s32.totalorder 1, %s9
      %p166 = scmp.lt.s32.totalorder %s9, 5
      %p167 = pnand %p165, %p166
      %p168 = pneg %p167
      // Predicated region
      $region29: #{conv1x1_pad1_double_hardswish.1} parent=5 // pred_check
        _
      $region30: #{conv1x1_pad1_double_hardswish.1} parent=5 // pred_check_branch
        %170 = sbr.rel (%p167) target = $region32
      $region31: #{conv1x1_pad1_double_hardswish.1} parent=5 // pred_region
        %s171 = ssub.s32 %s9, 1
        %s172 = smul.u32 2, %s19
        %s173 = ssub.s32 3, %s172
        %p174 = scmp.lt.s32.totalorder %s173, 2
        %s175 = scalar_select %p174, %s173, 2
        %s176 = smul.u32 64, %s175
        %p177 = scmp.lt.s32.totalorder %s18, 1
        %s178 = scalar_select %p177, %s18, 1
        %p179 = scmp.lt.s32.totalorder %s172, 2
        %s180 = scalar_select %p179, %s172, 2
        %s181 = smul.addr %s178, 3
        %s182 = sadd.s32 %s180, %s181
        %s183 = smul.addr %s182, 4
        %s184 = scalar_lea.vmem %s0, %s183
        %p185 = pneg %p49
        %p186 = pneg %p46
        %p187 = pneg %p70
        %p188 = pneg %p67
        %p189 = pneg %p91
        %p190 = pneg %p88
        %p191 = pneg %p119
        %p192 = pneg %p116
        %s193 = sand.u32 %s106, 1
        %s194 = sand.u32 %s106, 1
        %s195 = smul.addr %s194, 64
        %s196 = scalar_lea.vmem [#allocation2], %s195
        %s197 = smul.u32 2, %s19
        %s198 = ssub.s32 3, %s197
        %p199 = scmp.lt.s32.totalorder %s198, 2
        %s200 = scalar_select %p199, %s198, 2
        %s201 = smul.u32 64, %s200
        %p202 = scmp.lt.s32.totalorder %s18, 1
        %s203 = scalar_select %p202, %s18, 1
        %p204 = scmp.lt.s32.totalorder %s197, 2
        %s205 = scalar_select %p204, %s197, 2
        %s206 = smul.addr %s203, 3
        %s207 = sadd.s32 %s205, %s206
        %s208 = smul.addr %s207, 4
        %s209 = scalar_lea.vmem %s0, %s208
        %s210 = smul.u32 2, %s19
        %s211 = ssub.s32 3, %s210
        %p212 = scmp.lt.s32.totalorder %s211, 2
        %s213 = scalar_select %p212, %s211, 2
        %s214 = smul.u32 64, %s213
        %s215 = smul.u32 2, %s19
        %s216 = ssub.s32 3, %s215
        %p217 = scmp.lt.s32.totalorder %s216, 2
        %s218 = scalar_select %p217, %s216, 2
        %s219 = smul.u32 512, %s218
        %v220 = vld [vmem:[%s209] sm:$0x77]
        %v221 = vld [vmem:[%s1] sm:$0xff]
        %v222 = vld [vmem:[%s1 + $0x8] sm:$0xff]
        %v223 = vld [vmem:[%s1 + $0x10] sm:$0xff]
        %v224 = vld [vmem:[%s1 + $0x18] sm:$0xff]
        %226 = vset.pattern.permute.xlu0 0
        %227 = vperm.xlu0 %226, %v221
        %v228 = vpop.permute.xlu0 %227
        %231 = vset.pattern.permute.xlu0 0
        %232 = vperm.xlu0 %231, %v222
        %v233 = vpop.permute.xlu0 %232
        %236 = vset.pattern.permute.xlu0 0
        %237 = vperm.xlu0 %236, %v223
        %v238 = vpop.permute.xlu0 %237
        %241 = vset.pattern.permute.xlu0 0
        %242 = vperm.xlu0 %241, %v224
        %v243 = vpop.permute.xlu0 %242
        %v246 = vlaneseq
        %v247 = vshrl.u32 %v246, 7
        %v248 = vsub.s32 0, %v247
        %v249 = vrot.slane %v220, %v248
        %v250 = vlaneseq
        %v251 = vshrl.u32 %v250, 7
        %v252 = vsub.s32 4, %v251
        %v253 = vrot.slane %v220, %v252
        %v256 = vlaneseq
        %v257 = vshrl.u32 %v256, 7
        %v258 = vsub.s32 0, %v257
        %v259 = vrot.slane %v249, %v258
        %v260 = vlaneseq
        %v261 = vshrl.u32 %v260, 7
        %v262 = vsub.s32 0, %v261
        %v263 = vrot.slane %v253, %v262
        %v264 = vmul.f32 %v228, %v259
        %v265 = vmul.f32 %v228, %v263
        %v266 = vmul.f32 %v233, %v259
        %v267 = vmul.f32 %v233, %v263
        %v268 = vmul.f32 %v238, %v259
        %v269 = vmul.f32 %v238, %v263
        %v270 = vmul.f32 %v243, %v259
        %v271 = vmul.f32 %v243, %v263
        %v272 = vld [vmem:[%s2] sm:$0xff]
        %v273 = vld [vmem:[%s2 + $0x8] sm:$0xff]
        %v274 = vld [vmem:[%s2 + $0x10] sm:$0xff]
        %v275 = vld [vmem:[%s2 + $0x18] sm:$0xff]
        %277 = vset.pattern.permute.xlu0 0
        %278 = vperm.xlu0 %277, %v272
        %v279 = vpop.permute.xlu0 %278
        %282 = vset.pattern.permute.xlu0 0
        %283 = vperm.xlu0 %282, %v273
        %v284 = vpop.permute.xlu0 %283
        %287 = vset.pattern.permute.xlu0 0
        %288 = vperm.xlu0 %287, %v274
        %v289 = vpop.permute.xlu0 %288
        %292 = vset.pattern.permute.xlu0 0
        %293 = vperm.xlu0 %292, %v275
        %v294 = vpop.permute.xlu0 %293
        %v296 = vadd.f32 %v264, %v279
        %v297 = vadd.f32 %v265, %v279
        %v298 = vadd.f32 %v266, %v284
        %v299 = vadd.f32 %v267, %v284
        %v300 = vadd.f32 %v268, %v289
        %v301 = vadd.f32 %v269, %v289
        %v302 = vadd.f32 %v270, %v294
        %v303 = vadd.f32 %v271, %v294
        %304 = vset.pattern.permute.xlu0 1
        %305 = vperm.xlu0 %304, %v221
        %v306 = vpop.permute.xlu0 %305
        %308 = vset.pattern.permute.xlu0 1
        %309 = vperm.xlu0 %308, %v222
        %v310 = vpop.permute.xlu0 %309
        %312 = vset.pattern.permute.xlu0 1
        %313 = vperm.xlu0 %312, %v223
        %v314 = vpop.permute.xlu0 %313
        %316 = vset.pattern.permute.xlu0 1
        %317 = vperm.xlu0 %316, %v224
        %v318 = vpop.permute.xlu0 %317
        %v320 = vlaneseq
        %v321 = vshrl.u32 %v320, 7
        %v322 = vsub.s32 1, %v321
        %v323 = vrot.slane %v220, %v322
        %v324 = vlaneseq
        %v325 = vshrl.u32 %v324, 7
        %v326 = vsub.s32 5, %v325
        %v327 = vrot.slane %v220, %v326
        %v330 = vlaneseq
        %v331 = vshrl.u32 %v330, 7
        %v332 = vsub.s32 1, %v331
        %v333 = vrot.slane %v323, %v332
        %v334 = vlaneseq
        %v335 = vshrl.u32 %v334, 7
        %v336 = vsub.s32 1, %v335
        %v337 = vrot.slane %v327, %v336
        %v338 = vmul.f32 %v306, %v333
        %v339 = vmul.f32 %v306, %v337
        %v340 = vmul.f32 %v310, %v333
        %v341 = vmul.f32 %v310, %v337
        %v342 = vmul.f32 %v314, %v333
        %v343 = vmul.f32 %v314, %v337
        %v344 = vmul.f32 %v318, %v333
        %v345 = vmul.f32 %v318, %v337
        %v346 = vadd.f32 %v296, %v338
        %v347 = vadd.f32 %v297, %v339
        %v348 = vadd.f32 %v298, %v340
        %v349 = vadd.f32 %v299, %v341
        %v350 = vadd.f32 %v300, %v342
        %v351 = vadd.f32 %v301, %v343
        %v352 = vadd.f32 %v302, %v344
        %v353 = vadd.f32 %v303, %v345
        %354 = vset.pattern.permute.xlu0 2
        %355 = vperm.xlu0 %354, %v221
        %v356 = vpop.permute.xlu0 %355
        %358 = vset.pattern.permute.xlu0 2
        %359 = vperm.xlu0 %358, %v222
        %v360 = vpop.permute.xlu0 %359
        %362 = vset.pattern.permute.xlu0 2
        %363 = vperm.xlu0 %362, %v223
        %v364 = vpop.permute.xlu0 %363
        %366 = vset.pattern.permute.xlu0 2
        %367 = vperm.xlu0 %366, %v224
        %v368 = vpop.permute.xlu0 %367
        %v370 = vlaneseq
        %v371 = vshrl.u32 %v370, 7
        %v372 = vsub.s32 2, %v371
        %v373 = vrot.slane %v220, %v372
        %v374 = vlaneseq
        %v375 = vshrl.u32 %v374, 7
        %v376 = vsub.s32 6, %v375
        %v377 = vrot.slane %v220, %v376
        %v380 = vlaneseq
        %v381 = vshrl.u32 %v380, 7
        %v382 = vsub.s32 2, %v381
        %v383 = vrot.slane %v373, %v382
        %v384 = vlaneseq
        %v385 = vshrl.u32 %v384, 7
        %v386 = vsub.s32 2, %v385
        %v387 = vrot.slane %v377, %v386
        %v388 = vmul.f32 %v356, %v383
        %v389 = vmul.f32 %v356, %v387
        %v390 = vmul.f32 %v360, %v383
        %v391 = vmul.f32 %v360, %v387
        %v392 = vmul.f32 %v364, %v383
        %v393 = vmul.f32 %v364, %v387
        %v394 = vmul.f32 %v368, %v383
        %v395 = vmul.f32 %v368, %v387
        %v396 = vadd.f32 %v346, %v388
        %v397 = vadd.f32 %v347, %v389
        %v398 = vadd.f32 %v348, %v390
        %v399 = vadd.f32 %v349, %v391
        %v400 = vadd.f32 %v350, %v392
        %v401 = vadd.f32 %v351, %v393
        %v402 = vadd.f32 %v352, %v394
        %v403 = vadd.f32 %v353, %v395
        %v404 = vadd.f32 %v396, 3.0
        %v405 = vadd.f32 %v397, 3.0
        %v406 = vadd.f32 %v398, 3.0
        %v407 = vadd.f32 %v399, 3.0
        %v408 = vadd.f32 %v400, 3.0
        %v409 = vadd.f32 %v401, 3.0
        %v410 = vadd.f32 %v402, 3.0
        %v411 = vadd.f32 %v403, 3.0
        %v412 = vmax.f32 %v404, 0.0
        %v413 = vmax.f32 %v405, 0.0
        %v414 = vmax.f32 %v406, 0.0
        %v415 = vmax.f32 %v407, 0.0
        %v416 = vmax.f32 %v408, 0.0
        %v417 = vmax.f32 %v409, 0.0
        %v418 = vmax.f32 %v410, 0.0
        %v419 = vmax.f32 %v411, 0.0
        %v420 = vmin.f32 %v412, 6.0
        %v421 = vmin.f32 %v413, 6.0
        %v422 = vmin.f32 %v414, 6.0
        %v423 = vmin.f32 %v415, 6.0
        %v424 = vmin.f32 %v416, 6.0
        %v425 = vmin.f32 %v417, 6.0
        %v426 = vmin.f32 %v418, 6.0
        %v427 = vmin.f32 %v419, 6.0
        %v428 = vmul.f32 %v396, %v420
        %v429 = vmul.f32 %v397, %v421
        %v430 = vmul.f32 %v398, %v422
        %v431 = vmul.f32 %v399, %v423
        %v432 = vmul.f32 %v400, %v424
        %v433 = vmul.f32 %v401, %v425
        %v434 = vmul.f32 %v402, %v426
        %v435 = vmul.f32 %v403, %v427
        %v436 = vmul.f32 %v428, 0.33333334
        %v437 = vmul.f32 %v429, 0.33333334
        %v438 = vmul.f32 %v430, 0.33333334
        %v439 = vmul.f32 %v431, 0.33333334
        %v440 = vmul.f32 %v432, 0.33333334
        %v441 = vmul.f32 %v433, 0.33333334
        %v442 = vmul.f32 %v434, 0.33333334
        %v443 = vmul.f32 %v435, 0.33333334
        %444 = vst [vmem:[%s196] sm:$0xff] %v436
        %445 = vst [vmem:[%s196 + $0x8] sm:$0xff] %v437
        %446 = vst [vmem:[%s196 + $0x10] sm:$0xff] %v438
        %447 = vst [vmem:[%s196 + $0x18] sm:$0xff] %v439
        %448 = vst [vmem:[%s196 + $0x20] sm:$0xff] %v440
        %449 = vst [vmem:[%s196 + $0x28] sm:$0xff] %v441
        %450 = vst [vmem:[%s196 + $0x30] sm:$0xff] %v442
        %451 = vst [vmem:[%s196 + $0x38] sm:$0xff] %v443
        %s452 = sand.u32 %s106, 1
        %s453 = sand.u32 %s106, 1
        %s454 = smul.addr %s453, 64
        %s455 = scalar_lea.vmem [#allocation2], %s454
        // Predicated region
        $region33: #{conv1x1_pad1_double_hardswish.1} parent=31 // pred_check
          %p456 = pneg %p116
        $region34: #{conv1x1_pad1_double_hardswish.1} parent=31 // pred_check_branch
          %458 = sbr.rel (%p456) target = $region36
        $region35: #{conv1x1_pad1_double_hardswish.1} parent=31 // pred_region
          %s459 = smul.u32 2, %s19
          %s460 = ssub.s32 3, %s459
          %p461 = scmp.lt.s32.totalorder %s460, 2
          %s462 = scalar_select %p461, %s460, 2
          %s463 = smul.u32 512, %s462
          %p464 = scmp.ne.s32.totalorder 0, %s463
          %s465 = smul.addr %s18, 12
          %s466 = sadd.s32 %s459, %s465
          %s467 = smul.addr %s466, 8
          %s468 = scalar_lea.vmem %s3, %s467
          %s469 = smul.u32 %s462, 8
          // Predicated region
          $region37: #{conv1x1_pad1_double_hardswish.1} parent=35 // pred_check
            %p470 = pneg %p464
          $region38: #{conv1x1_pad1_double_hardswish.1} parent=35 // pred_check_branch
            %472 = sbr.rel (%p470) target = $region40
          $region39: #{conv1x1_pad1_double_hardswish.1} parent=35 // pred_region
            %p473 = scmp.lt.u32.totalorder %s469, 8
            %p474 = pneg %p473
            // Predicated region
            $region41: #{conv1x1_pad1_double_hardswish.1} parent=39 // pred_check
              _
            $region42: #{conv1x1_pad1_double_hardswish.1} parent=39 // pred_check_branch
              %476 = sbr.rel (%p473) target = $region44
            $region43: #{conv1x1_pad1_double_hardswish.1} parent=39 // pred_region
              %s497 = sand.u32 %s469, 7
              %p498 = scmp.eq.s32.totalorder %s497, 0
              // Predicated region
              $region56: #{conv1x1_pad1_double_hardswish.1} parent=43 // pred_check
                %p499 = pneg %p498
              $region57: #{conv1x1_pad1_double_hardswish.1} parent=43 // pred_check_branch
                %501 = sbr.rel (%p499) target = $region59
              $region58: #{conv1x1_pad1_double_hardswish.1} parent=43 // pred_region
                %s502 = sshrl.u32 %s469, 3
                %s503 = sshrl.u32 %s502, 4
                // While loop
                $region60: #{conv1x1_pad1_double_hardswish.1} parent=58 // loop_pre_header
                  _
                $region61: #{conv1x1_pad1_double_hardswish.1} parent=58 // loop_header
                  %s507 = sphi 0, %s509
                  %p508 = scmp.ge.s32.totalorder %s507, %s503
                  %s512 = sphi 0, %s645
                  %s513 = sphi %s455, %s648
                  %s514 = sphi %s468, %s649
                $region62: #{conv1x1_pad1_double_hardswish.1} parent=58 // loop_header_branch
                  %511 = sbr.rel (%p508) target = $region66
                $region63: #{conv1x1_pad1_double_hardswish.1} parent=58 // loop_body
                  %v515 = vld [vmem:[%s513] sm:$0xff]
                  %516 = vst [vmem:[%s514] sm:$0xff] %v515
                  %v517 = vld [vmem:[%s513 + $0x8] sm:$0xff]
                  %518 = vst [vmem:[%s514 + $0x8] sm:$0xff] %v517
                  %v519 = vld [vmem:[%s513 + $0x10] sm:$0xff]
                  %520 = vst [vmem:[%s514 + $0x10] sm:$0xff] %v519
                  %v521 = vld [vmem:[%s513 + $0x18] sm:$0xff]
                  %522 = vst [vmem:[%s514 + $0x18] sm:$0xff] %v521
                  %v523 = vld [vmem:[%s513 + $0x20] sm:$0xff]
                  %524 = vst [vmem:[%s514 + $0x20] sm:$0xff] %v523
                  %v525 = vld [vmem:[%s513 + $0x28] sm:$0xff]
                  %526 = vst [vmem:[%s514 + $0x28] sm:$0xff] %v525
                  %v527 = vld [vmem:[%s513 + $0x30] sm:$0xff]
                  %528 = vst [vmem:[%s514 + $0x30] sm:$0xff] %v527
                  %v529 = vld [vmem:[%s513 + $0x38] sm:$0xff]
                  %530 = vst [vmem:[%s514 + $0x38] sm:$0xff] %v529
                  %v531 = vld [vmem:[%s513 + $0x40] sm:$0xff]
                  %532 = vst [vmem:[%s514 + $0x40] sm:$0xff] %v531
                  %v533 = vld [vmem:[%s513 + $0x48] sm:$0xff]
                  %534 = vst [vmem:[%s514 + $0x48] sm:$0xff] %v533
                  %v535 = vld [vmem:[%s513 + $0x50] sm:$0xff]
                  %536 = vst [vmem:[%s514 + $0x50] sm:$0xff] %v535
                  %v537 = vld [vmem:[%s513 + $0x58] sm:$0xff]
                  %538 = vst [vmem:[%s514 + $0x58] sm:$0xff] %v537
                  %v539 = vld [vmem:[%s513 + $0x60] sm:$0xff]
                  %540 = vst [vmem:[%s514 + $0x60] sm:$0xff] %v539
                  %v541 = vld [vmem:[%s513 + $0x68] sm:$0xff]
                  %542 = vst [vmem:[%s514 + $0x68] sm:$0xff] %v541
                  %v543 = vld [vmem:[%s513 + $0x70] sm:$0xff]
                  %544 = vst [vmem:[%s514 + $0x70] sm:$0xff] %v543
                  %v545 = vld [vmem:[%s513 + $0x78] sm:$0xff]
                  %546 = vst [vmem:[%s514 + $0x78] sm:$0xff] %v545
                  %v547 = vld [vmem:[%s513 + $0x10] sm:$0xff]
                  %548 = vst [vmem:[%s514 + $0x18] sm:$0xff] %v547
                  %v549 = vld [vmem:[%s513 + $0x18] sm:$0xff]
                  %550 = vst [vmem:[%s514 + $0x20] sm:$0xff] %v549
                  %v551 = vld [vmem:[%s513 + $0x20] sm:$0xff]
                  %552 = vst [vmem:[%s514 + $0x28] sm:$0xff] %v551
                  %v553 = vld [vmem:[%s513 + $0x28] sm:$0xff]
                  %554 = vst [vmem:[%s514 + $0x30] sm:$0xff] %v553
                  %v555 = vld [vmem:[%s513 + $0x30] sm:$0xff]
                  %556 = vst [vmem:[%s514 + $0x38] sm:$0xff] %v555
                  %v557 = vld [vmem:[%s513 + $0x38] sm:$0xff]
                  %558 = vst [vmem:[%s514 + $0x40] sm:$0xff] %v557
                  %v559 = vld [vmem:[%s513 + $0x40] sm:$0xff]
                  %560 = vst [vmem:[%s514 + $0x48] sm:$0xff] %v559
                  %v561 = vld [vmem:[%s513 + $0x48] sm:$0xff]
                  %562 = vst [vmem:[%s514 + $0x50] sm:$0xff] %v561
                  %v563 = vld [vmem:[%s513 + $0x50] sm:$0xff]
                  %564 = vst [vmem:[%s514 + $0x58] sm:$0xff] %v563
                  %v565 = vld [vmem:[%s513 + $0x58] sm:$0xff]
                  %566 = vst [vmem:[%s514 + $0x60] sm:$0xff] %v565
                  %v567 = vld [vmem:[%s513 + $0x60] sm:$0xff]
                  %568 = vst [vmem:[%s514 + $0x68] sm:$0xff] %v567
                  %v569 = vld [vmem:[%s513 + $0x68] sm:$0xff]
                  %570 = vst [vmem:[%s514 + $0x70] sm:$0xff] %v569
                  %v571 = vld [vmem:[%s513 + $0x70] sm:$0xff]
                  %572 = vst [vmem:[%s514 + $0x78] sm:$0xff] %v571
                  %v573 = vld [vmem:[%s513 + $0x78] sm:$0xff]
                  %574 = vst [vmem:[%s514 + $0x80] sm:$0xff] %v573
                  %v575 = vld [vmem:[%s513 + $0x80] sm:$0xff]
                  %576 = vst [vmem:[%s514 + $0x88] sm:$0xff] %v575
                  %v577 = vld [vmem:[%s513 + $0x88] sm:$0xff]
                  %578 = vst [vmem:[%s514 + $0x90] sm:$0xff] %v577
                  %v579 = vld [vmem:[%s513 + $0x20] sm:$0xff]
                  %580 = vst [vmem:[%s514 + $0x30] sm:$0xff] %v579
                  %v581 = vld [vmem:[%s513 + $0x28] sm:$0xff]
                  %582 = vst [vmem:[%s514 + $0x38] sm:$0xff] %v581
                  %v583 = vld [vmem:[%s513 + $0x30] sm:$0xff]
                  %584 = vst [vmem:[%s514 + $0x40] sm:$0xff] %v583
                  %v585 = vld [vmem:[%s513 + $0x38] sm:$0xff]
                  %586 = vst [vmem:[%s514 + $0x48] sm:$0xff] %v585
                  %v587 = vld [vmem:[%s513 + $0x40] sm:$0xff]
                  %588 = vst [vmem:[%s514 + $0x50] sm:$0xff] %v587
                  %v589 = vld [vmem:[%s513 + $0x48] sm:$0xff]
                  %590 = vst [vmem:[%s514 + $0x58] sm:$0xff] %v589
                  %v591 = vld [vmem:[%s513 + $0x50] sm:$0xff]
                  %592 = vst [vmem:[%s514 + $0x60] sm:$0xff] %v591
                  %v593 = vld [vmem:[%s513 + $0x58] sm:$0xff]
                  %594 = vst [vmem:[%s514 + $0x68] sm:$0xff] %v593
                  %v595 = vld [vmem:[%s513 + $0x60] sm:$0xff]
                  %596 = vst [vmem:[%s514 + $0x70] sm:$0xff] %v595
                  %v597 = vld [vmem:[%s513 + $0x68] sm:$0xff]
                  %598 = vst [vmem:[%s514 + $0x78] sm:$0xff] %v597
                  %v599 = vld [vmem:[%s513 + $0x70] sm:$0xff]
                  %600 = vst [vmem:[%s514 + $0x80] sm:$0xff] %v599
                  %v601 = vld [vmem:[%s513 + $0x78] sm:$0xff]
                  %602 = vst [vmem:[%s514 + $0x88] sm:$0xff] %v601
                  %v603 = vld [vmem:[%s513 + $0x80] sm:$0xff]
                  %604 = vst [vmem:[%s514 + $0x90] sm:$0xff] %v603
                  %v605 = vld [vmem:[%s513 + $0x88] sm:$0xff]
                  %606 = vst [vmem:[%s514 + $0x98] sm:$0xff] %v605
                  %v607 = vld [vmem:[%s513 + $0x90] sm:$0xff]
                  %608 = vst [vmem:[%s514 + $0xa0] sm:$0xff] %v607
                  %v609 = vld [vmem:[%s513 + $0x98] sm:$0xff]
                  %610 = vst [vmem:[%s514 + $0xa8] sm:$0xff] %v609
                  %v611 = vld [vmem:[%s513 + $0x30] sm:$0xff]
                  %612 = vst [vmem:[%s514 + $0x48] sm:$0xff] %v611
                  %v613 = vld [vmem:[%s513 + $0x38] sm:$0xff]
                  %614 = vst [vmem:[%s514 + $0x50] sm:$0xff] %v613
                  %v615 = vld [vmem:[%s513 + $0x40] sm:$0xff]
                  %616 = vst [vmem:[%s514 + $0x58] sm:$0xff] %v615
                  %v617 = vld [vmem:[%s513 + $0x48] sm:$0xff]
                  %618 = vst [vmem:[%s514 + $0x60] sm:$0xff] %v617
                  %v619 = vld [vmem:[%s513 + $0x50] sm:$0xff]
                  %620 = vst [vmem:[%s514 + $0x68] sm:$0xff] %v619
                  %v621 = vld [vmem:[%s513 + $0x58] sm:$0xff]
                  %622 = vst [vmem:[%s514 + $0x70] sm:$0xff] %v621
                  %v623 = vld [vmem:[%s513 + $0x60] sm:$0xff]
                  %624 = vst [vmem:[%s514 + $0x78] sm:$0xff] %v623
                  %v625 = vld [vmem:[%s513 + $0x68] sm:$0xff]
                  %626 = vst [vmem:[%s514 + $0x80] sm:$0xff] %v625
                  %v627 = vld [vmem:[%s513 + $0x70] sm:$0xff]
                  %628 = vst [vmem:[%s514 + $0x88] sm:$0xff] %v627
                  %v629 = vld [vmem:[%s513 + $0x78] sm:$0xff]
                  %630 = vst [vmem:[%s514 + $0x90] sm:$0xff] %v629
                  %v631 = vld [vmem:[%s513 + $0x80] sm:$0xff]
                  %632 = vst [vmem:[%s514 + $0x98] sm:$0xff] %v631
                  %v633 = vld [vmem:[%s513 + $0x88] sm:$0xff]
                  %634 = vst [vmem:[%s514 + $0xa0] sm:$0xff] %v633
                  %v635 = vld [vmem:[%s513 + $0x90] sm:$0xff]
                  %636 = vst [vmem:[%s514 + $0xa8] sm:$0xff] %v635
                  %v637 = vld [vmem:[%s513 + $0x98] sm:$0xff]
                  %638 = vst [vmem:[%s514 + $0xb0] sm:$0xff] %v637
                  %v639 = vld [vmem:[%s513 + $0xa0] sm:$0xff]
                  %640 = vst [vmem:[%s514 + $0xb8] sm:$0xff] %v639
                  %v641 = vld [vmem:[%s513 + $0xa8] sm:$0xff]
                  %642 = vst [vmem:[%s514 + $0xc0] sm:$0xff] %v641
                  %s643 = sadd.s32 1, %s512
                  %p644 = scmp.ge.s32.totalorder %s643, %s503
                  %s645 = scalar_select %p644, 0, %s643
                  %s646 = smul.u32 %s645, 128
                  %s647 = smul.u32 %s645, 128
                  %s648 = scalar_lea.vmem %s455, %s646 [#allocation2]
                  %s649 = scalar_lea.vmem %s468, %s647
                $region64: #{conv1x1_pad1_double_hardswish.1} parent=58 // loop_footer
                  %s509 = sadd.s32 %s507, 1
                $region65: #{conv1x1_pad1_double_hardswish.1} parent=58 // loop_footer_branch
                  %506 = sbr.rel target = $region61
                $region66: #{conv1x1_pad1_double_hardswish.1} parent=58 // loop_exit
                  _
                %s650 = sshrl.u32 %s502, 4
                %s651 = sand.u32 %s502, 15
                %s652 = smul.u32 %s650, 16
                %s653 = smul.u32 128, %s652
                %s654 = sshra.s32 %s653, 4
                %s655 = scalar_lea.vmem %s455, %s654 [#allocation2]
                %s656 = smul.u32 128, %s652
                %s657 = sshra.s32 %s656, 4
                %s658 = scalar_lea.vmem %s468, %s657
                // While loop
                $region67: #{conv1x1_pad1_double_hardswish.1} parent=58 // loop_pre_header
                  _
                $region68: #{conv1x1_pad1_double_hardswish.1} parent=58 // loop_header
                  %s662 = sphi 0, %s664
                  %p663 = scmp.ge.s32.totalorder %s662, %s651
                  %s667 = sphi 0, %s680
                  %s668 = sphi %s655, %s683
                  %s669 = sphi %s658, %s684
                $region69: #{conv1x1_pad1_double_hardswish.1} parent=58 // loop_header_branch
                  %666 = sbr.rel (%p663) target = $region73
                $region70: #{conv1x1_pad1_double_hardswish.1} parent=58 // loop_body
                  %v670 = vld [vmem:[%s668] sm:$0xff]
                  %671 = vst [vmem:[%s669] sm:$0xff] %v670
                  %v672 = vld [vmem:[%s668 + $0x10] sm:$0xff]
                  %673 = vst [vmem:[%s669 + $0x18] sm:$0xff] %v672
                  %v674 = vld [vmem:[%s668 + $0x20] sm:$0xff]
                  %675 = vst [vmem:[%s669 + $0x30] sm:$0xff] %v674
                  %v676 = vld [vmem:[%s668 + $0x30] sm:$0xff]
                  %677 = vst [vmem:[%s669 + $0x48] sm:$0xff] %v676
                  %s678 = sadd.s32 1, %s667
                  %p679 = scmp.ge.s32.totalorder %s678, %s651
                  %s680 = scalar_select %p679, 0, %s678
                  %s681 = smul.u32 %s680, 8
                  %s682 = smul.u32 %s680, 8
                  %s683 = scalar_lea.vmem %s655, %s681 [#allocation2]
                  %s684 = scalar_lea.vmem %s658, %s682
                $region71: #{conv1x1_pad1_double_hardswish.1} parent=58 // loop_footer
                  %s664 = sadd.s32 %s662, 1
                $region72: #{conv1x1_pad1_double_hardswish.1} parent=58 // loop_footer_branch
                  %661 = sbr.rel target = $region68
                $region73: #{conv1x1_pad1_double_hardswish.1} parent=58 // loop_exit
                  _
              $region59: #{conv1x1_pad1_double_hardswish.1} parent=43 // pred_fallthru
                _
              %p685 = pneg %p498
              // Predicated region
              $region74: #{conv1x1_pad1_double_hardswish.1} parent=43 // pred_check
                _
              $region75: #{conv1x1_pad1_double_hardswish.1} parent=43 // pred_check_branch
                %687 = sbr.rel (%p498) target = $region77
              $region76: #{conv1x1_pad1_double_hardswish.1} parent=43 // pred_region
                %s688 = sand.u32 %s469, 7
                %s689 = ssub.s32 %s469, %s688
                %s690 = scalar_lea.vmem %s455, %s689 [#allocation2]
                %s691 = ssub.s32 %s469, %s688
                %s692 = scalar_lea.vmem %s468, %s691
                %s693 = sshrl.u32 %s469, 3
                %s694 = sshrl.u32 %s693, 4
                // While loop
                $region78: #{conv1x1_pad1_double_hardswish.1} parent=76 // loop_pre_header
                  _
                $region79: #{conv1x1_pad1_double_hardswish.1} parent=76 // loop_header
                  %s698 = sphi 0, %s700
                  %p699 = scmp.ge.s32.totalorder %s698, %s694
                  %s703 = sphi 0, %s836
                  %s704 = sphi %s455, %s839
                  %s705 = sphi %s468, %s840
                $region80: #{conv1x1_pad1_double_hardswish.1} parent=76 // loop_header_branch
                  %702 = sbr.rel (%p699) target = $region84
                $region81: #{conv1x1_pad1_double_hardswish.1} parent=76 // loop_body
                  %v706 = vld [vmem:[%s704] sm:$0xff]
                  %707 = vst [vmem:[%s705] sm:$0xff] %v706
                  %v708 = vld [vmem:[%s704 + $0x8] sm:$0xff]
                  %709 = vst [vmem:[%s705 + $0x8] sm:$0xff] %v708
                  %v710 = vld [vmem:[%s704 + $0x10] sm:$0xff]
                  %711 = vst [vmem:[%s705 + $0x10] sm:$0xff] %v710
                  %v712 = vld [vmem:[%s704 + $0x18] sm:$0xff]
                  %713 = vst [vmem:[%s705 + $0x18] sm:$0xff] %v712
                  %v714 = vld [vmem:[%s704 + $0x20] sm:$0xff]
                  %715 = vst [vmem:[%s705 + $0x20] sm:$0xff] %v714
                  %v716 = vld [vmem:[%s704 + $0x28] sm:$0xff]
                  %717 = vst [vmem:[%s705 + $0x28] sm:$0xff] %v716
                  %v718 = vld [vmem:[%s704 + $0x30] sm:$0xff]
                  %719 = vst [vmem:[%s705 + $0x30] sm:$0xff] %v718
                  %v720 = vld [vmem:[%s704 + $0x38] sm:$0xff]
                  %721 = vst [vmem:[%s705 + $0x38] sm:$0xff] %v720
                  %v722 = vld [vmem:[%s704 + $0x40] sm:$0xff]
                  %723 = vst [vmem:[%s705 + $0x40] sm:$0xff] %v722
                  %v724 = vld [vmem:[%s704 + $0x48] sm:$0xff]
                  %725 = vst [vmem:[%s705 + $0x48] sm:$0xff] %v724
                  %v726 = vld [vmem:[%s704 + $0x50] sm:$0xff]
                  %727 = vst [vmem:[%s705 + $0x50] sm:$0xff] %v726
                  %v728 = vld [vmem:[%s704 + $0x58] sm:$0xff]
                  %729 = vst [vmem:[%s705 + $0x58] sm:$0xff] %v728
                  %v730 = vld [vmem:[%s704 + $0x60] sm:$0xff]
                  %731 = vst [vmem:[%s705 + $0x60] sm:$0xff] %v730
                  %v732 = vld [vmem:[%s704 + $0x68] sm:$0xff]
                  %733 = vst [vmem:[%s705 + $0x68] sm:$0xff] %v732
                  %v734 = vld [vmem:[%s704 + $0x70] sm:$0xff]
                  %735 = vst [vmem:[%s705 + $0x70] sm:$0xff] %v734
                  %v736 = vld [vmem:[%s704 + $0x78] sm:$0xff]
                  %737 = vst [vmem:[%s705 + $0x78] sm:$0xff] %v736
                  %v738 = vld [vmem:[%s704 + $0x10] sm:$0xff]
                  %739 = vst [vmem:[%s705 + $0x18] sm:$0xff] %v738
                  %v740 = vld [vmem:[%s704 + $0x18] sm:$0xff]
                  %741 = vst [vmem:[%s705 + $0x20] sm:$0xff] %v740
                  %v742 = vld [vmem:[%s704 + $0x20] sm:$0xff]
                  %743 = vst [vmem:[%s705 + $0x28] sm:$0xff] %v742
                  %v744 = vld [vmem:[%s704 + $0x28] sm:$0xff]
                  %745 = vst [vmem:[%s705 + $0x30] sm:$0xff] %v744
                  %v746 = vld [vmem:[%s704 + $0x30] sm:$0xff]
                  %747 = vst [vmem:[%s705 + $0x38] sm:$0xff] %v746
                  %v748 = vld [vmem:[%s704 + $0x38] sm:$0xff]
                  %749 = vst [vmem:[%s705 + $0x40] sm:$0xff] %v748
                  %v750 = vld [vmem:[%s704 + $0x40] sm:$0xff]
                  %751 = vst [vmem:[%s705 + $0x48] sm:$0xff] %v750
                  %v752 = vld [vmem:[%s704 + $0x48] sm:$0xff]
                  %753 = vst [vmem:[%s705 + $0x50] sm:$0xff] %v752
                  %v754 = vld [vmem:[%s704 + $0x50] sm:$0xff]
                  %755 = vst [vmem:[%s705 + $0x58] sm:$0xff] %v754
                  %v756 = vld [vmem:[%s704 + $0x58] sm:$0xff]
                  %757 = vst [vmem:[%s705 + $0x60] sm:$0xff] %v756
                  %v758 = vld [vmem:[%s704 + $0x60] sm:$0xff]
                  %759 = vst [vmem:[%s705 + $0x68] sm:$0xff] %v758
                  %v760 = vld [vmem:[%s704 + $0x68] sm:$0xff]
                  %761 = vst [vmem:[%s705 + $0x70] sm:$0xff] %v760
                  %v762 = vld [vmem:[%s704 + $0x70] sm:$0xff]
                  %763 = vst [vmem:[%s705 + $0x78] sm:$0xff] %v762
                  %v764 = vld [vmem:[%s704 + $0x78] sm:$0xff]
                  %765 = vst [vmem:[%s705 + $0x80] sm:$0xff] %v764
                  %v766 = vld [vmem:[%s704 + $0x80] sm:$0xff]
                  %767 = vst [vmem:[%s705 + $0x88] sm:$0xff] %v766
                  %v768 = vld [vmem:[%s704 + $0x88] sm:$0xff]
                  %769 = vst [vmem:[%s705 + $0x90] sm:$0xff] %v768
                  %v770 = vld [vmem:[%s704 + $0x20] sm:$0xff]
                  %771 = vst [vmem:[%s705 + $0x30] sm:$0xff] %v770
                  %v772 = vld [vmem:[%s704 + $0x28] sm:$0xff]
                  %773 = vst [vmem:[%s705 + $0x38] sm:$0xff] %v772
                  %v774 = vld [vmem:[%s704 + $0x30] sm:$0xff]
                  %775 = vst [vmem:[%s705 + $0x40] sm:$0xff] %v774
                  %v776 = vld [vmem:[%s704 + $0x38] sm:$0xff]
                  %777 = vst [vmem:[%s705 + $0x48] sm:$0xff] %v776
                  %v778 = vld [vmem:[%s704 + $0x40] sm:$0xff]
                  %779 = vst [vmem:[%s705 + $0x50] sm:$0xff] %v778
                  %v780 = vld [vmem:[%s704 + $0x48] sm:$0xff]
                  %781 = vst [vmem:[%s705 + $0x58] sm:$0xff] %v780
                  %v782 = vld [vmem:[%s704 + $0x50] sm:$0xff]
                  %783 = vst [vmem:[%s705 + $0x60] sm:$0xff] %v782
                  %v784 = vld [vmem:[%s704 + $0x58] sm:$0xff]
                  %785 = vst [vmem:[%s705 + $0x68] sm:$0xff] %v784
                  %v786 = vld [vmem:[%s704 + $0x60] sm:$0xff]
                  %787 = vst [vmem:[%s705 + $0x70] sm:$0xff] %v786
                  %v788 = vld [vmem:[%s704 + $0x68] sm:$0xff]
                  %789 = vst [vmem:[%s705 + $0x78] sm:$0xff] %v788
                  %v790 = vld [vmem:[%s704 + $0x70] sm:$0xff]
                  %791 = vst [vmem:[%s705 + $0x80] sm:$0xff] %v790
                  %v792 = vld [vmem:[%s704 + $0x78] sm:$0xff]
                  %793 = vst [vmem:[%s705 + $0x88] sm:$0xff] %v792
                  %v794 = vld [vmem:[%s704 + $0x80] sm:$0xff]
                  %795 = vst [vmem:[%s705 + $0x90] sm:$0xff] %v794
                  %v796 = vld [vmem:[%s704 + $0x88] sm:$0xff]
                  %797 = vst [vmem:[%s705 + $0x98] sm:$0xff] %v796
                  %v798 = vld [vmem:[%s704 + $0x90] sm:$0xff]
                  %799 = vst [vmem:[%s705 + $0xa0] sm:$0xff] %v798
                  %v800 = vld [vmem:[%s704 + $0x98] sm:$0xff]
                  %801 = vst [vmem:[%s705 + $0xa8] sm:$0xff] %v800
                  %v802 = vld [vmem:[%s704 + $0x30] sm:$0xff]
                  %803 = vst [vmem:[%s705 + $0x48] sm:$0xff] %v802
                  %v804 = vld [vmem:[%s704 + $0x38] sm:$0xff]
                  %805 = vst [vmem:[%s705 + $0x50] sm:$0xff] %v804
                  %v806 = vld [vmem:[%s704 + $0x40] sm:$0xff]
                  %807 = vst [vmem:[%s705 + $0x58] sm:$0xff] %v806
                  %v808 = vld [vmem:[%s704 + $0x48] sm:$0xff]
                  %809 = vst [vmem:[%s705 + $0x60] sm:$0xff] %v808
                  %v810 = vld [vmem:[%s704 + $0x50] sm:$0xff]
                  %811 = vst [vmem:[%s705 + $0x68] sm:$0xff] %v810
                  %v812 = vld [vmem:[%s704 + $0x58] sm:$0xff]
                  %813 = vst [vmem:[%s705 + $0x70] sm:$0xff] %v812
                  %v814 = vld [vmem:[%s704 + $0x60] sm:$0xff]
                  %815 = vst [vmem:[%s705 + $0x78] sm:$0xff] %v814
                  %v816 = vld [vmem:[%s704 + $0x68] sm:$0xff]
                  %817 = vst [vmem:[%s705 + $0x80] sm:$0xff] %v816
                  %v818 = vld [vmem:[%s704 + $0x70] sm:$0xff]
                  %819 = vst [vmem:[%s705 + $0x88] sm:$0xff] %v818
                  %v820 = vld [vmem:[%s704 + $0x78] sm:$0xff]
                  %821 = vst [vmem:[%s705 + $0x90] sm:$0xff] %v820
                  %v822 = vld [vmem:[%s704 + $0x80] sm:$0xff]
                  %823 = vst [vmem:[%s705 + $0x98] sm:$0xff] %v822
                  %v824 = vld [vmem:[%s704 + $0x88] sm:$0xff]
                  %825 = vst [vmem:[%s705 + $0xa0] sm:$0xff] %v824
                  %v826 = vld [vmem:[%s704 + $0x90] sm:$0xff]
                  %827 = vst [vmem:[%s705 + $0xa8] sm:$0xff] %v826
                  %v828 = vld [vmem:[%s704 + $0x98] sm:$0xff]
                  %829 = vst [vmem:[%s705 + $0xb0] sm:$0xff] %v828
                  %v830 = vld [vmem:[%s704 + $0xa0] sm:$0xff]
                  %831 = vst [vmem:[%s705 + $0xb8] sm:$0xff] %v830
                  %v832 = vld [vmem:[%s704 + $0xa8] sm:$0xff]
                  %833 = vst [vmem:[%s705 + $0xc0] sm:$0xff] %v832
                  %s834 = sadd.s32 1, %s703
                  %p835 = scmp.ge.s32.totalorder %s834, %s694
                  %s836 = scalar_select %p835, 0, %s834
                  %s837 = smul.u32 %s836, 128
                  %s838 = smul.u32 %s836, 128
                  %s839 = scalar_lea.vmem %s455, %s837 [#allocation2]
                  %s840 = scalar_lea.vmem %s468, %s838
                $region82: #{conv1x1_pad1_double_hardswish.1} parent=76 // loop_footer
                  %s700 = sadd.s32 %s698, 1
                $region83: #{conv1x1_pad1_double_hardswish.1} parent=76 // loop_footer_branch
                  %697 = sbr.rel target = $region79
                $region84: #{conv1x1_pad1_double_hardswish.1} parent=76 // loop_exit
                  _
                %s841 = sshrl.u32 %s693, 4
                %s842 = sand.u32 %s693, 15
                %s843 = smul.u32 %s841, 16
                %s844 = smul.u32 128, %s843
                %s845 = sshra.s32 %s844, 4
                %s846 = scalar_lea.vmem %s455, %s845 [#allocation2]
                %s847 = smul.u32 128, %s843
                %s848 = sshra.s32 %s847, 4
                %s849 = scalar_lea.vmem %s468, %s848
                // While loop
                $region85: #{conv1x1_pad1_double_hardswish.1} parent=76 // loop_pre_header
                  _
                $region86: #{conv1x1_pad1_double_hardswish.1} parent=76 // loop_header
                  %s853 = sphi 0, %s855
                  %p854 = scmp.ge.s32.totalorder %s853, %s842
                  %s858 = sphi 0, %s871
                  %s859 = sphi %s846, %s874
                  %s860 = sphi %s849, %s875
                $region87: #{conv1x1_pad1_double_hardswish.1} parent=76 // loop_header_branch
                  %857 = sbr.rel (%p854) target = $region91
                $region88: #{conv1x1_pad1_double_hardswish.1} parent=76 // loop_body
                  %v861 = vld [vmem:[%s859] sm:$0xff]
                  %862 = vst [vmem:[%s860] sm:$0xff] %v861
                  %v863 = vld [vmem:[%s859 + $0x10] sm:$0xff]
                  %864 = vst [vmem:[%s860 + $0x18] sm:$0xff] %v863
                  %v865 = vld [vmem:[%s859 + $0x20] sm:$0xff]
                  %866 = vst [vmem:[%s860 + $0x30] sm:$0xff] %v865
                  %v867 = vld [vmem:[%s859 + $0x30] sm:$0xff]
                  %868 = vst [vmem:[%s860 + $0x48] sm:$0xff] %v867
                  %s869 = sadd.s32 1, %s858
                  %p870 = scmp.ge.s32.totalorder %s869, %s842
                  %s871 = scalar_select %p870, 0, %s869
                  %s872 = smul.u32 %s871, 8
                  %s873 = smul.u32 %s871, 8
                  %s874 = scalar_lea.vmem %s846, %s872 [#allocation2]
                  %s875 = scalar_lea.vmem %s849, %s873
                $region89: #{conv1x1_pad1_double_hardswish.1} parent=76 // loop_footer
                  %s855 = sadd.s32 %s853, 1
                $region90: #{conv1x1_pad1_double_hardswish.1} parent=76 // loop_footer_branch
                  %852 = sbr.rel target = $region86
                $region91: #{conv1x1_pad1_double_hardswish.1} parent=76 // loop_exit
                  _
                %s876 = sshllo.u32 0, %s688
                loop: start=0, step=1, limit=1
                $region92: #{conv1x1_pad1_double_hardswish.1} parent=76 // loop_pre_header
                  _
                $region93: #{conv1x1_pad1_double_hardswish.1} parent=76 // loop_header
                  %s878 = sphi 0, %s882
                  %p879 = scmp.ge.s32.totalorder %s878, 1
                  %s883 = sphi %s690, %s690
                  %s884 = sphi %s692, %s692
                $region94: #{conv1x1_pad1_double_hardswish.1} parent=76 // loop_header_branch
                  %881 = sbr.rel (%p879) target = $region98
                $region95: #{conv1x1_pad1_double_hardswish.1} parent=76 // loop_body
                  %v885 = vld [vmem:[%s883] sm:%s876]
                  %886 = vst [vmem:[%s884] sm:%s876] %v885
                  %v887 = vld [vmem:[%s883 + $0x10] sm:%s876]
                  %888 = vst [vmem:[%s884 + $0x18] sm:%s876] %v887
                  %v889 = vld [vmem:[%s883 + $0x20] sm:%s876]
                  %890 = vst [vmem:[%s884 + $0x30] sm:%s876] %v889
                  %v891 = vld [vmem:[%s883 + $0x30] sm:%s876]
                  %892 = vst [vmem:[%s884 + $0x48] sm:%s876] %v891
                $region96: #{conv1x1_pad1_double_hardswish.1} parent=76 // loop_footer
                  %s882 = sadd.s32 1, %s878
                $region97: #{conv1x1_pad1_double_hardswish.1} parent=76 // loop_footer_branch
                  %877 = sbr.rel target = $region93
                $region98: #{conv1x1_pad1_double_hardswish.1} parent=76 // loop_exit
                  _
              $region77: #{conv1x1_pad1_double_hardswish.1} parent=43 // pred_fallthru
                _
            $region44: #{conv1x1_pad1_double_hardswish.1} parent=39 // pred_fallthru
              _
            // Predicated region
            $region45: #{conv1x1_pad1_double_hardswish.1} parent=39 // pred_check
              %p477 = pneg %p473
            $region46: #{conv1x1_pad1_double_hardswish.1} parent=39 // pred_check_branch
              %479 = sbr.rel (%p477) target = $region48
            $region47: #{conv1x1_pad1_double_hardswish.1} parent=39 // pred_region
              %s480 = sshllo.u32 0, %s469
              loop: start=0, step=1, limit=1
              $region49: #{conv1x1_pad1_double_hardswish.1} parent=47 // loop_pre_header
                _
              $region50: #{conv1x1_pad1_double_hardswish.1} parent=47 // loop_header
                %s482 = sphi 0, %s486
                %p483 = scmp.ge.s32.totalorder %s482, 1
                %s487 = sphi %s455, %s455
                %s488 = sphi %s468, %s468
              $region51: #{conv1x1_pad1_double_hardswish.1} parent=47 // loop_header_branch
                %485 = sbr.rel (%p483) target = $region55
              $region52: #{conv1x1_pad1_double_hardswish.1} parent=47 // loop_body
                %v489 = vld [vmem:[%s487] sm:%s480]
                %490 = vst [vmem:[%s488] sm:%s480] %v489
                %v491 = vld [vmem:[%s487 + $0x10] sm:%s480]
                %492 = vst [vmem:[%s488 + $0x18] sm:%s480] %v491
                %v493 = vld [vmem:[%s487 + $0x20] sm:%s480]
                %494 = vst [vmem:[%s488 + $0x30] sm:%s480] %v493
                %v495 = vld [vmem:[%s487 + $0x30] sm:%s480]
                %496 = vst [vmem:[%s488 + $0x48] sm:%s480] %v495
              $region53: #{conv1x1_pad1_double_hardswish.1} parent=47 // loop_footer
                %s486 = sadd.s32 1, %s482
              $region54: #{conv1x1_pad1_double_hardswish.1} parent=47 // loop_footer_branch
                %481 = sbr.rel target = $region50
              $region55: #{conv1x1_pad1_double_hardswish.1} parent=47 // loop_exit
                _
            $region48: #{conv1x1_pad1_double_hardswish.1} parent=39 // pred_fallthru
              _
          $region40: #{conv1x1_pad1_double_hardswish.1} parent=35 // pred_fallthru
            _
          %893 = vnop
        $region36: #{conv1x1_pad1_double_hardswish.1} parent=31 // pred_fallthru
          _
      $region32: #{conv1x1_pad1_double_hardswish.1} parent=5 // pred_fallthru
        _
      %p894 = scmp.le.s32.totalorder 2, %s9
      // Predicated region
      $region99: #{conv1x1_pad1_double_hardswish.1} parent=5 // pred_check
        %p895 = pneg %p894
      $region100: #{conv1x1_pad1_double_hardswish.1} parent=5 // pred_check_branch
        %897 = sbr.rel (%p895) target = $region102
      $region101: #{conv1x1_pad1_double_hardswish.1} parent=5 // pred_region
        %s898 = ssub.s32 %s9, 2
        // Predicated region
        $region103: #{conv1x1_pad1_double_hardswish.1} parent=101 // pred_check
          %p899 = pneg %p122
        $region104: #{conv1x1_pad1_double_hardswish.1} parent=101 // pred_check_branch
          %901 = sbr.rel (%p899) target = $region106
        $region105: #{conv1x1_pad1_double_hardswish.1} parent=101 // pred_region
          %s902 = sand.u32 %s107, 1
          %s903 = sand.u32 %s107, 1
          %s904 = smul.addr %s903, 64
          %s905 = scalar_lea.vmem [#allocation2], %s904
        $region106: #{conv1x1_pad1_double_hardswish.1} parent=101 // pred_fallthru
          _
      $region102: #{conv1x1_pad1_double_hardswish.1} parent=5 // pred_fallthru
        _
    $region6: #{conv1x1_pad1_double_hardswish.1} parent=1 // loop_footer
      %s13 = sadd.s32 1, %s9
    $region7: #{conv1x1_pad1_double_hardswish.1} parent=1 // loop_footer_branch
      %8 = sbr.rel target = $region3
    $region8: #{conv1x1_pad1_double_hardswish.1} parent=1 // loop_exit
      _

</llo_original>
